<compile_context>
chip_gen: v7x
topology: tpu7x:2x2x1
jax: 0.10.0
libtpu: 0.0.40
codegen_flags: <defaults>
</compile_context>

<pallas_src>
import functools

import jax
import jax.numpy as jnp
from jax.experimental import pallas as pl
from jax.experimental.pallas import tpu as pltpu


# ----------------------------------------------------------------------------
# Fused kernel: encoder (step 0) + profile_num decode steps on grid=(P,)
# ----------------------------------------------------------------------------
def _make_fused_kernel(training: bool, bos_idx: int):
    def kernel(*refs):
        if training:
            (inv_tau_ref, gn_ref,
             emb_ref, wenc_ref, benc_ref, etop_ref, wq_ref, wk_ref, wv_ref,
             wo_ref, wgen_ref, bgen_ref,
             prob_ref, gumbel_ref,
             x_s, k_s, v_s) = refs
        else:
            (emb_ref, wenc_ref, benc_ref, etop_ref, wq_ref, wk_ref, wv_ref,
             wo_ref, wgen_ref, bgen_ref,
             idx_ref,
             x_s, k_s, v_s) = refs

        t = pl.program_id(0)
        B, L, H = k_s.shape
        V = etop_ref.shape[0]

        # ---- step 0: encoder + loop-invariant K/V + BOS one-hot -----------
        @pl.when(t == 0)
        def _init():
            # id_hidden = tanh(emb_id @ W_enc + b_enc), flattened to (B*L, H)
            idh = jnp.tanh(
                jnp.dot(emb_ref[...], wenc_ref[...],
                        preferred_element_type=jnp.float32) + benc_ref[...])
            idh_b = idh.astype(jnp.bfloat16)
            k_s[...] = jnp.dot(idh_b, wk_ref[...],
                               preferred_element_type=jnp.float32).reshape(B, L, H)
            v_s[...] = jnp.dot(idh_b, wv_ref[...],
                               preferred_element_type=jnp.float32).reshape(B, L, H)
            lane0 = jax.lax.broadcasted_iota(jnp.int32, (B, V), 1)
            x_s[...] = (lane0 == bos_idx).astype(jnp.float32)

        # ---- one decode step ----------------------------------------------
        x = x_s[...]                                                     # (B, V)
        emb = jnp.dot(x.astype(jnp.bfloat16), etop_ref[...],
                      preferred_element_type=jnp.float32)                # (B, H)
        q = jnp.dot(emb.astype(jnp.bfloat16), wq_ref[...],
                    preferred_element_type=jnp.float32)                  # (B, H)

        # single-step cross-attention over the encoded user-id sequence
        scale = 1.0 / (float(H) ** 0.5)
        scores = jnp.sum(q[:, None, :] * k_s[...], axis=-1) * scale      # (B, L)
        scores = scores - jnp.max(scores, axis=-1, keepdims=True)
        e = jnp.exp(scores)
        attn = e * pl.reciprocal(jnp.sum(e, axis=-1, keepdims=True), approx=True)
        ctx = jnp.sum(attn[:, :, None] * v_s[...], axis=1)               # (B, H)

        dec = jnp.dot((ctx + emb).astype(jnp.bfloat16), wo_ref[...],
                      preferred_element_type=jnp.float32)                # (B, H)

        # gen_proj: Linear(hidden, n_topic_vocab) + softmax
        logits = jnp.dot(dec.astype(jnp.bfloat16), wgen_ref[...],
                         preferred_element_type=jnp.float32) + bgen_ref[...]
        logits = logits - jnp.max(logits, axis=-1, keepdims=True)
        pe = jnp.exp(logits)
        prob = pe * pl.reciprocal(jnp.sum(pe, axis=-1, keepdims=True), approx=True)

        if training:
            prob_ref[...] = prob[None]
            # Gumbel-softmax on normed log-probs == softmax((logits + g) / tau)
            inv_tau = inv_tau_ref[t]
            gl = (logits + gn_ref[0]) * inv_tau
            gl = gl - jnp.max(gl, axis=-1, keepdims=True)
            ge = jnp.exp(gl)
            gumbel = ge * pl.reciprocal(jnp.sum(ge, axis=-1, keepdims=True),
                                        approx=True)
            gumbel_ref[...] = gumbel[None]
            x_s[...] = gumbel                      # next-step (soft) word
        else:
            # argmax (first maximal index) written lane-dense + next one-hot
            lane = jax.lax.broadcasted_iota(jnp.int32, (B, V), 1)
            m = jnp.max(prob, axis=-1, keepdims=True)
            cand = jnp.where(prob >= m, lane, V)
            idx = jnp.min(cand, axis=-1, keepdims=True)                  # (B, 1)
            idx_ref[...] = jnp.broadcast_to(idx, (1, B, 128))
            x_s[...] = (lane == idx).astype(jnp.float32)

    return kernel


def _resident_spec(arr):
    """Full-shape block, constant index map -> DMA'd once, resident in VMEM."""
    zeros = (0,) * arr.ndim
    return pl.BlockSpec(arr.shape, lambda t, _z=zeros: _z)


# ----------------------------------------------------------------------------
# Parameters
# ----------------------------------------------------------------------------
def init_params(key, id_vocab, n_topic_vocab, hidden_size):
    ks = jax.random.split(key, 9)
    s = 0.02
    H, V = hidden_size, n_topic_vocab
    return {
        "E_id":  s * jax.random.normal(ks[0], (id_vocab, H), jnp.float32),
        "W_enc": s * jax.random.normal(ks[1], (H, H), jnp.float32),
        "b_enc": jnp.zeros((1, H), jnp.float32),
        "E_top": s * jax.random.normal(ks[2], (V, H), jnp.float32),
        "Wq":    s * jax.random.normal(ks[3], (H, H), jnp.float32),
        "Wk":    s * jax.random.normal(ks[4], (H, H), jnp.float32),
        "Wv":    s * jax.random.normal(ks[5], (H, H), jnp.float32),
        "Wo":    s * jax.random.normal(ks[6], (H, H), jnp.float32),
        "Wgen":  s * jax.random.normal(ks[7], (H, V), jnp.float32),
        "bgen":  jnp.zeros((1, V), jnp.float32),
    }


def _tau_schedule(P, tau0, tau_decay, tau_min):
    return jnp.asarray([max(tau0 * (tau_decay ** t), tau_min) for t in range(P)],
                       dtype=jnp.float32)


# ----------------------------------------------------------------------------
# PriorProfile forward (fused Pallas kernel)
# ----------------------------------------------------------------------------
def prior_profile_forward(id_tokens, params, *, training, key,
                          profile_num=3, bos_idx=0,
                          tau0=1.0, tau_decay=0.95, tau_min=0.1):
    """Mirrors PriorProfile.forward.

    training=True  -> (seq_gen_prob (B,P,V), seq_gen_gumbel[:,1:,:] (B,P,V))
    training=False -> seq_gen_gumbel[:,1:] (B,P) int32 token ids
    """
    bs, L = id_tokens.shape
    H = params["W_enc"].shape[0]
    V = params["E_top"].shape[0]
    P = profile_num

    # Host/XLA glue (once per forward): embedding gather + bf16 cast of MXU
    # operands.  Everything else runs inside the single fused pallas_call.
    # TODO(synk): the real external encoder/decoder transformers are opaque in
    # the reference module; synthetic deterministic networks stand in for them.
    emb_flat = params["E_id"][id_tokens].reshape(bs * L, H).astype(jnp.bfloat16)
    bf = lambda k: params[k].astype(jnp.bfloat16)

    common_inputs = (emb_flat, bf("W_enc"), params["b_enc"], bf("E_top"),
                     bf("Wq"), bf("Wk"), bf("Wv"), bf("Wo"),
                     bf("Wgen"), params["bgen"])
    common_specs = [_resident_spec(x) for x in common_inputs]

    scratch_shapes = [
        pltpu.VMEM((bs, V), jnp.float32),      # x: last generated word (carried)
        pltpu.VMEM((bs, L, H), jnp.float32),   # K projection of id_hidden
        pltpu.VMEM((bs, L, H), jnp.float32),   # V projection of id_hidden
    ]
    # Step axis is a sequential carry -> "arbitrary".  If batch grows (v7x,
    # 2 TCs/chip), add a leading batch grid axis marked "parallel"; if V/H
    # scale up, tile E_top/Wgen over a vocab axis and set vmem_limit_bytes.
    cparams = pltpu.CompilerParams(dimension_semantics=("arbitrary",))
    step_out = lambda last: pl.BlockSpec((1, bs, last), lambda t: (t, 0, 0))

    kernel = _make_fused_kernel(training, bos_idx)

    if training:
        # TauScheduler.step_on() schedule + all Gumbel noise drawn up front.
        tau = _tau_schedule(P, tau0, tau_decay, tau_min)
        inv_tau = 1.0 / tau                                           # (P,)
        u = jax.random.uniform(key, (P, bs, V), dtype=jnp.float32,
                               minval=1e-6, maxval=1.0 - 1e-6)
        gnoise = -jnp.log(-jnp.log(u))                                # (P, B, V)

        prob, gumbel = pl.pallas_call(
            kernel,
            grid=(P,),
            in_specs=([pl.BlockSpec(memory_space=pltpu.MemorySpace.SMEM),
                       pl.BlockSpec((1, bs, V), lambda t: (t, 0, 0))]
                      + common_specs),
            out_specs=(step_out(V), step_out(V)),
            out_shape=(jax.ShapeDtypeStruct((P, bs, V), jnp.float32),
                       jax.ShapeDtypeStruct((P, bs, V), jnp.float32)),
            scratch_shapes=scratch_shapes,
            compiler_params=cparams,
        )(inv_tau, gnoise, *common_inputs)
        # (P,B,V) -> (B,P,V) to match the module's output layout
        return jnp.transpose(prob, (1, 0, 2)), jnp.transpose(gumbel, (1, 0, 2))
    else:
        idx_lane = pl.pallas_call(
            kernel,
            grid=(P,),
            in_specs=common_specs,
            out_specs=step_out(128),
            out_shape=jax.ShapeDtypeStruct((P, bs, 128), jnp.int32),
            scratch_shapes=scratch_shapes,
            compiler_params=cparams,
        )(*common_inputs)
        return jnp.transpose(idx_lane[:, :, 0], (1, 0))               # (B, P)


# ----------------------------------------------------------------------------
# Pure-JAX reference (same synthetic encoder/decoder, same bf16 cast points)
# ----------------------------------------------------------------------------
def prior_profile_reference(id_tokens, params, *, training, key,
                            profile_num=3, bos_idx=0,
                            tau0=1.0, tau_decay=0.95, tau_min=0.1):
    bs, L = id_tokens.shape
    H = params["W_enc"].shape[0]
    V = params["E_top"].shape[0]
    P = profile_num
    bf = lambda k: params[k].astype(jnp.bfloat16)
    dot = lambda a, w: jnp.dot(a.astype(jnp.bfloat16), w,
                               preferred_element_type=jnp.float32)

    emb_id = params["E_id"][id_tokens].reshape(bs * L, H)
    idh = jnp.tanh(dot(emb_id, bf("W_enc")) + params["b_enc"])
    k = dot(idh, bf("Wk")).reshape(bs, L, H)
    v = dot(idh, bf("Wv")).reshape(bs, L, H)

    x = jax.nn.one_hot(jnp.full((bs,), bos_idx, jnp.int32), V, dtype=jnp.float32)
    if training:
        tau = _tau_schedule(P, tau0, tau_decay, tau_min)
        inv_tau = 1.0 / tau
        u = jax.random.uniform(key, (P, bs, V), dtype=jnp.float32,
                               minval=1e-6, maxval=1.0 - 1e-6)
        g = -jnp.log(-jnp.log(u))

    probs, gums, ids = [], [], []
    scale = 1.0 / (float(H) ** 0.5)
    for t in range(P):
        emb = dot(x, bf("E_top"))
        q = dot(emb, bf("Wq"))
        scores = jnp.einsum("bh,blh->bl", q, k) * scale
        attn = jax.nn.softmax(scores, axis=-1)
        ctx = jnp.einsum("bl,blh->bh", attn, v)
        dec = dot(ctx + emb, bf("Wo"))
        logits = dot(dec, bf("Wgen")) + params["bgen"]
        prob = jax.nn.softmax(logits, axis=-1)
        if training:
            probs.append(prob)
            gum = jax.nn.softmax((logits + g[t]) * inv_tau[t], axis=-1)
            gums.append(gum)
            x = gum
        else:
            idx = jnp.argmax(prob, axis=-1)
            ids.append(idx)
            x = jax.nn.one_hot(idx, V, dtype=jnp.float32)
    if training:
        return jnp.stack(probs, 1), jnp.stack(gums, 1)
    return jnp.stack(ids, 1).astype(jnp.int32)


# ----------------------------------------------------------------------------
if __name__ == "__main__":
    BS, L_ID, HIDDEN, N_TOPIC_VOCAB = 2, 8, 32, 128
    ID_VOCAB, PROFILE_NUM, BOS_IDX = 64, 3, 0

    key = jax.random.PRNGKey(0)
    k_id, k_param, k_fwd = jax.random.split(key, 3)

    id_tokens = jax.random.randint(k_id, (BS, L_ID), 0, ID_VOCAB, dtype=jnp.int32)
    params = init_params(k_param, ID_VOCAB, N_TOPIC_VOCAB, HIDDEN)

    infer_fn = jax.jit(functools.partial(
        prior_profile_forward, training=False,
        profile_num=PROFILE_NUM, bos_idx=BOS_IDX))
    train_fn = jax.jit(functools.partial(
        prior_profile_forward, training=True,
        profile_num=PROFILE_NUM, bos_idx=BOS_IDX))

    # inference branch: (B, profile_num) int32 topic ids
    gen_ids = jax.block_until_ready(infer_fn(id_tokens, params, key=k_fwd))
    assert gen_ids.shape == (BS, PROFILE_NUM)
    assert gen_ids.dtype == jnp.int32

    # training branch: (B, P, V) probs and (B, P, V) gumbel words
    probs, gumbels = train_fn(id_tokens, params, key=k_fwd)
    probs = jax.block_until_ready(probs)
    gumbels = jax.block_until_ready(gumbels)
    assert probs.shape == (BS, PROFILE_NUM, N_TOPIC_VOCAB)
    assert gumbels.shape == (BS, PROFILE_NUM, N_TOPIC_VOCAB)

    # correctness vs pure-JAX reference (same bf16 cast points; kernel uses
    # approx-EUP reciprocals, hence the modest tolerances)
    ref_ids = prior_profile_reference(
        id_tokens, params, training=False, key=k_fwd,
        profile_num=PROFILE_NUM, bos_idx=BOS_IDX)
    ref_probs, ref_gums = prior_profile_reference(
        id_tokens, params, training=True, key=k_fwd,
        profile_num=PROFILE_NUM, bos_idx=BOS_IDX)
    assert bool(jnp.array_equal(gen_ids, ref_ids)), "inference ids mismatch"
    assert bool(jnp.allclose(probs, ref_probs, atol=5e-3, rtol=5e-2)), \
        "training probs mismatch"
    assert bool(jnp.allclose(gumbels, ref_gums, atol=5e-3, rtol=5e-2)), \
        "training gumbel words mismatch"

    print("KERNEL_OK")
</pallas_src>

<mosaic_0001>
module attributes {stable_mosaic.version = 11 : i64} {
  func.func @kernel(%arg0: i32, %arg1: memref<16x32xbf16, #tpu.memory_space<vmem>>, %arg2: memref<32x32xbf16, #tpu.memory_space<vmem>>, %arg3: memref<1x32xf32, #tpu.memory_space<vmem>>, %arg4: memref<128x32xbf16, #tpu.memory_space<vmem>>, %arg5: memref<32x32xbf16, #tpu.memory_space<vmem>>, %arg6: memref<32x32xbf16, #tpu.memory_space<vmem>>, %arg7: memref<32x32xbf16, #tpu.memory_space<vmem>>, %arg8: memref<32x32xbf16, #tpu.memory_space<vmem>>, %arg9: memref<32x128xbf16, #tpu.memory_space<vmem>>, %arg10: memref<1x128xf32, #tpu.memory_space<vmem>>, %arg11: memref<1x2x128xi32, #tpu.memory_space<vmem>>, %arg12: memref<2x128xf32, #tpu.memory_space<vmem>>, %arg13: memref<2x8x32xf32, #tpu.memory_space<vmem>>, %arg14: memref<2x8x32xf32, #tpu.memory_space<vmem>>) attributes {dimension_semantics = [#tpu.dimension_semantics<arbitrary>], iteration_bounds = array<i64: 3>, scalar_prefetch = 0 : i64, scratch_operands = 3 : i64, tpu.core_type = #tpu.core_type<tc>, window_params = [{pipeline_mode = #tpu.pipeline_mode<synchronous>, transform_indices = @transform_0, window_bounds = array<i64: 16, 32>}, {pipeline_mode = #tpu.pipeline_mode<synchronous>, transform_indices = @transform_1, window_bounds = array<i64: 32, 32>}, {pipeline_mode = #tpu.pipeline_mode<synchronous>, transform_indices = @transform_2, window_bounds = array<i64: 1, 32>}, {pipeline_mode = #tpu.pipeline_mode<synchronous>, transform_indices = @transform_3, window_bounds = array<i64: 128, 32>}, {pipeline_mode = #tpu.pipeline_mode<synchronous>, transform_indices = @transform_4, window_bounds = array<i64: 32, 32>}, {pipeline_mode = #tpu.pipeline_mode<synchronous>, transform_indices = @transform_5, window_bounds = array<i64: 32, 32>}, {pipeline_mode = #tpu.pipeline_mode<synchronous>, transform_indices = @transform_6, window_bounds = array<i64: 32, 32>}, {pipeline_mode = #tpu.pipeline_mode<synchronous>, transform_indices = @transform_7, window_bounds = array<i64: 32, 32>}, {pipeline_mode = #tpu.pipeline_mode<synchronous>, transform_indices = @transform_8, window_bounds = array<i64: 32, 128>}, {pipeline_mode = #tpu.pipeline_mode<synchronous>, transform_indices = @transform_9, window_bounds = array<i64: 1, 128>}, {transform_indices = @transform_10, window_bounds = array<i64: 1, 2, 128>}]} {
    %c0_i32 = arith.constant 0 : i32
    %0 = arith.cmpi eq, %arg0, %c0_i32 : i32
    %1 = arith.extui %0 : i1 to i32
    %c0_i32_0 = arith.constant 0 : i32
    %2 = arith.cmpi ne, %1, %c0_i32_0 : i32
    scf.if %2 {
      %c0_35 = arith.constant 0 : index
      %c0_36 = arith.constant 0 : index
      %69 = vector.load %arg1[%c0_35, %c0_36] : memref<16x32xbf16, #tpu.memory_space<vmem>>, vector<16x32xbf16>
      %c0_37 = arith.constant 0 : index
      %c0_38 = arith.constant 0 : index
      %70 = vector.load %arg2[%c0_37, %c0_38] : memref<32x32xbf16, #tpu.memory_space<vmem>>, vector<32x32xbf16>
      %cst_39 = arith.constant dense<0.000000e+00> : vector<16x32xf32>
      %71 = tpu.matmul %69, %70, %cst_39 {dimension_numbers = #tpu.dot_dimension_numbers<[1], [0], [0], [1], [0, 0, 1, 1], [], []>} : vector<16x32xbf16>, vector<32x32xbf16>, vector<16x32xf32> -> vector<16x32xf32>
      %c0_40 = arith.constant 0 : index
      %c0_41 = arith.constant 0 : index
      %72 = vector.load %arg3[%c0_40, %c0_41] : memref<1x32xf32, #tpu.memory_space<vmem>>, vector<1x32xf32>
      %73 = vector.broadcast %72 : vector<1x32xf32> to vector<16x32xf32>
      %74 = arith.addf %71, %73 : vector<16x32xf32>
      %75 = math.tanh %74 : vector<16x32xf32>
      %76 = arith.truncf %75 : vector<16x32xf32> to vector<16x32xbf16>
      %c0_42 = arith.constant 0 : index
      %c0_43 = arith.constant 0 : index
      %77 = vector.load %arg6[%c0_42, %c0_43] : memref<32x32xbf16, #tpu.memory_space<vmem>>, vector<32x32xbf16>
      %cst_44 = arith.constant dense<0.000000e+00> : vector<16x32xf32>
      %78 = tpu.matmul %76, %77, %cst_44 {dimension_numbers = #tpu.dot_dimension_numbers<[1], [0], [0], [1], [0, 0, 1, 1], [], []>} : vector<16x32xbf16>, vector<32x32xbf16>, vector<16x32xf32> -> vector<16x32xf32>
      %79 = vector.shape_cast %78 : vector<16x32xf32> to vector<2x8x32xf32>
      %c0_45 = arith.constant 0 : index
      %c0_46 = arith.constant 0 : index
      %c0_47 = arith.constant 0 : index
      %80 = vector.load %arg13[%c0_45, %c0_46, %c0_47] : memref<2x8x32xf32, #tpu.memory_space<vmem>>, vector<2x8x32xf32>
      tpu.vector_store %arg13[%c0_45, %c0_46, %c0_47], %79 {strides = array<i32>} : memref<2x8x32xf32, #tpu.memory_space<vmem>>, vector<2x8x32xf32>,
      %c0_48 = arith.constant 0 : index
      %c0_49 = arith.constant 0 : index
      %81 = vector.load %arg7[%c0_48, %c0_49] : memref<32x32xbf16, #tpu.memory_space<vmem>>, vector<32x32xbf16>
      %cst_50 = arith.constant dense<0.000000e+00> : vector<16x32xf32>
      %82 = tpu.matmul %76, %81, %cst_50 {dimension_numbers = #tpu.dot_dimension_numbers<[1], [0], [0], [1], [0, 0, 1, 1], [], []>} : vector<16x32xbf16>, vector<32x32xbf16>, vector<16x32xf32> -> vector<16x32xf32>
      %83 = vector.shape_cast %82 : vector<16x32xf32> to vector<2x8x32xf32>
      %c0_51 = arith.constant 0 : index
      %c0_52 = arith.constant 0 : index
      %c0_53 = arith.constant 0 : index
      %84 = vector.load %arg14[%c0_51, %c0_52, %c0_53] : memref<2x8x32xf32, #tpu.memory_space<vmem>>, vector<2x8x32xf32>
      tpu.vector_store %arg14[%c0_51, %c0_52, %c0_53], %83 {strides = array<i32>} : memref<2x8x32xf32, #tpu.memory_space<vmem>>, vector<2x8x32xf32>,
      %85 = tpu.iota {dimensions = array<i32: 1>} : vector<2x128xi32>
      %c0_i32_54 = arith.constant 0 : i32
      %86 = vector.broadcast %c0_i32_54 : i32 to vector<2x128xi32>
      %87 = arith.cmpi eq, %85, %86 : vector<2x128xi32>
      %88 = arith.extui %87 : vector<2x128xi1> to vector<2x128xi32>
      %89 = arith.sitofp %88 : vector<2x128xi32> to vector<2x128xf32>
      %c0_55 = arith.constant 0 : index
      %c0_56 = arith.constant 0 : index
      %90 = vector.load %arg12[%c0_55, %c0_56] : memref<2x128xf32, #tpu.memory_space<vmem>>, vector<2x128xf32>
      tpu.vector_store %arg12[%c0_55, %c0_56], %89 {strides = array<i32>} : memref<2x128xf32, #tpu.memory_space<vmem>>, vector<2x128xf32>,
    } else {
    }
    %c0 = arith.constant 0 : index
    %c0_1 = arith.constant 0 : index
    %3 = vector.load %arg12[%c0, %c0_1] : memref<2x128xf32, #tpu.memory_space<vmem>>, vector<2x128xf32>
    %4 = arith.truncf %3 : vector<2x128xf32> to vector<2x128xbf16>
    %c0_2 = arith.constant 0 : index
    %c0_3 = arith.constant 0 : index
    %5 = vector.load %arg4[%c0_2, %c0_3] : memref<128x32xbf16, #tpu.memory_space<vmem>>, vector<128x32xbf16>
    %cst = arith.constant dense<0.000000e+00> : vector<2x32xf32>
    %6 = tpu.matmul %4, %5, %cst {dimension_numbers = #tpu.dot_dimension_numbers<[1], [0], [0], [1], [0, 0, 1, 1], [], []>} : vector<2x128xbf16>, vector<128x32xbf16>, vector<2x32xf32> -> vector<2x32xf32>
    %7 = arith.truncf %6 : vector<2x32xf32> to vector<2x32xbf16>
    %c0_4 = arith.constant 0 : index
    %c0_5 = arith.constant 0 : index
    %8 = vector.load %arg5[%c0_4, %c0_5] : memref<32x32xbf16, #tpu.memory_space<vmem>>, vector<32x32xbf16>
    %cst_6 = arith.constant dense<0.000000e+00> : vector<2x32xf32>
    %9 = tpu.matmul %7, %8, %cst_6 {dimension_numbers = #tpu.dot_dimension_numbers<[1], [0], [0], [1], [0, 0, 1, 1], [], []>} : vector<2x32xbf16>, vector<32x32xbf16>, vector<2x32xf32> -> vector<2x32xf32>
    %10 = vector.shape_cast %9 : vector<2x32xf32> to vector<2x1x32xf32>
    %c0_7 = arith.constant 0 : index
    %c0_8 = arith.constant 0 : index
    %c0_9 = arith.constant 0 : index
    %11 = vector.load %arg13[%c0_7, %c0_8, %c0_9] : memref<2x8x32xf32, #tpu.memory_space<vmem>>, vector<2x8x32xf32>
    %12 = vector.broadcast %10 : vector<2x1x32xf32> to vector<2x8x32xf32>
    %13 = arith.mulf %12, %11 : vector<2x8x32xf32>
    %cst_10 = arith.constant dense<0.000000e+00> : vector<2x8xf32>
    %14 = vector.multi_reduction <add>, %13, %cst_10 [2] : vector<2x8x32xf32> to vector<2x8xf32>
    %cst_11 = arith.constant 0.176776692 : f32
    %15 = vector.broadcast %cst_11 : f32 to vector<2x8xf32>
    %16 = arith.mulf %14, %15 : vector<2x8xf32>
    %cst_12 = arith.constant dense<0xFF800000> : vector<2xf32>
    %17 = vector.multi_reduction <maximumf>, %16, %cst_12 [1] : vector<2x8xf32> to vector<2xf32>
    %18 = vector.shape_cast %17 : vector<2xf32> to vector<2x1xf32>
    %19 = vector.broadcast %18 : vector<2x1xf32> to vector<2x8xf32>
    %20 = arith.subf %16, %19 : vector<2x8xf32>
    %21 = math.exp %20 : vector<2x8xf32>
    %cst_13 = arith.constant dense<0.000000e+00> : vector<2xf32>
    %22 = vector.multi_reduction <add>, %21, %cst_13 [1] : vector<2x8xf32> to vector<2xf32>
    %23 = vector.shape_cast %22 : vector<2xf32> to vector<2x1xf32>
    %24 = tpu.reciprocal %23 {approx = true} : vector<2x1xf32> -> vector<2x1xf32>
    %25 = vector.broadcast %24 : vector<2x1xf32> to vector<2x8xf32>
    %26 = arith.mulf %21, %25 : vector<2x8xf32>
    %27 = vector.shape_cast %26 : vector<2x8xf32> to vector<2x8x1xf32>
    %c0_14 = arith.constant 0 : index
    %c0_15 = arith.constant 0 : index
    %c0_16 = arith.constant 0 : index
    %28 = vector.load %arg14[%c0_14, %c0_15, %c0_16] : memref<2x8x32xf32, #tpu.memory_space<vmem>>, vector<2x8x32xf32>
    %29 = vector.broadcast %27 : vector<2x8x1xf32> to vector<2x8x32xf32>
    %30 = arith.mulf %29, %28 : vector<2x8x32xf32>
    %cst_17 = arith.constant dense<0.000000e+00> : vector<2x32xf32>
    %31 = vector.multi_reduction <add>, %30, %cst_17 [1] : vector<2x8x32xf32> to vector<2x32xf32>
    %32 = arith.addf %31, %6 : vector<2x32xf32>
    %33 = arith.truncf %32 : vector<2x32xf32> to vector<2x32xbf16>
    %c0_18 = arith.constant 0 : index
    %c0_19 = arith.constant 0 : index
    %34 = vector.load %arg8[%c0_18, %c0_19] : memref<32x32xbf16, #tpu.memory_space<vmem>>, vector<32x32xbf16>
    %cst_20 = arith.constant dense<0.000000e+00> : vector<2x32xf32>
    %35 = tpu.matmul %33, %34, %cst_20 {dimension_numbers = #tpu.dot_dimension_numbers<[1], [0], [0], [1], [0, 0, 1, 1], [], []>} : vector<2x32xbf16>, vector<32x32xbf16>, vector<2x32xf32> -> vector<2x32xf32>
    %36 = arith.truncf %35 : vector<2x32xf32> to vector<2x32xbf16>
    %c0_21 = arith.constant 0 : index
    %c0_22 = arith.constant 0 : index
    %37 = vector.load %arg9[%c0_21, %c0_22] : memref<32x128xbf16, #tpu.memory_space<vmem>>, vector<32x128xbf16>
    %cst_23 = arith.constant dense<0.000000e+00> : vector<2x128xf32>
    %38 = tpu.matmul %36, %37, %cst_23 {dimension_numbers = #tpu.dot_dimension_numbers<[1], [0], [0], [1], [0, 0, 1, 1], [], []>} : vector<2x32xbf16>, vector<32x128xbf16>, vector<2x128xf32> -> vector<2x128xf32>
    %c0_24 = arith.constant 0 : index
    %c0_25 = arith.constant 0 : index
    %39 = vector.load %arg10[%c0_24, %c0_25] : memref<1x128xf32, #tpu.memory_space<vmem>>, vector<1x128xf32>
    %40 = vector.broadcast %39 : vector<1x128xf32> to vector<2x128xf32>
    %41 = arith.addf %38, %40 : vector<2x128xf32>
    %cst_26 = arith.constant dense<0xFF800000> : vector<2xf32>
    %42 = vector.multi_reduction <maximumf>, %41, %cst_26 [1] : vector<2x128xf32> to vector<2xf32>
    %43 = vector.shape_cast %42 : vector<2xf32> to vector<2x1xf32>
    %44 = vector.broadcast %43 : vector<2x1xf32> to vector<2x128xf32>
    %45 = arith.subf %41, %44 : vector<2x128xf32>
    %46 = math.exp %45 : vector<2x128xf32>
    %cst_27 = arith.constant dense<0.000000e+00> : vector<2xf32>
    %47 = vector.multi_reduction <add>, %46, %cst_27 [1] : vector<2x128xf32> to vector<2xf32>
    %48 = vector.shape_cast %47 : vector<2xf32> to vector<2x1xf32>
    %49 = tpu.reciprocal %48 {approx = true} : vector<2x1xf32> -> vector<2x1xf32>
    %50 = vector.broadcast %49 : vector<2x1xf32> to vector<2x128xf32>
    %51 = arith.mulf %46, %50 : vector<2x128xf32>
    %52 = tpu.iota {dimensions = array<i32: 1>} : vector<2x128xi32>
    %cst_28 = arith.constant dense<0xFF800000> : vector<2xf32>
    %53 = vector.multi_reduction <maximumf>, %51, %cst_28 [1] : vector<2x128xf32> to vector<2xf32>
    %54 = vector.shape_cast %53 : vector<2xf32> to vector<2x1xf32>
    %55 = vector.broadcast %54 : vector<2x1xf32> to vector<2x128xf32>
    %56 = arith.cmpf oge, %51, %55 : vector<2x128xf32>
    %c128_i32 = arith.constant 128 : i32
    %57 = vector.broadcast %c128_i32 : i32 to vector<2x128xi32>
    %58 = arith.select %56, %52, %57 : vector<2x128xi1>, vector<2x128xi32>
    %cst_29 = arith.constant dense<2147483647> : vector<2xi32>
    %59 = vector.multi_reduction <minsi>, %58, %cst_29 [1] : vector<2x128xi32> to vector<2xi32>
    %60 = vector.shape_cast %59 : vector<2xi32> to vector<2x1xi32>
    %61 = vector.shape_cast %60 : vector<2x1xi32> to vector<1x2x1xi32>
    %62 = vector.broadcast %61 : vector<1x2x1xi32> to vector<1x2x128xi32>
    %c0_30 = arith.constant 0 : index
    %c0_31 = arith.constant 0 : index
    %c0_32 = arith.constant 0 : index
    %63 = vector.load %arg11[%c0_30, %c0_31, %c0_32] : memref<1x2x128xi32, #tpu.memory_space<vmem>>, vector<1x2x128xi32>
    tpu.vector_store %arg11[%c0_30, %c0_31, %c0_32], %62 {strides = array<i32>} : memref<1x2x128xi32, #tpu.memory_space<vmem>>, vector<1x2x128xi32>,
    %64 = vector.broadcast %60 : vector<2x1xi32> to vector<2x128xi32>
    %65 = arith.cmpi eq, %52, %64 : vector<2x128xi32>
    %66 = arith.extui %65 : vector<2x128xi1> to vector<2x128xi32>
    %67 = arith.sitofp %66 : vector<2x128xi32> to vector<2x128xf32>
    %c0_33 = arith.constant 0 : index
    %c0_34 = arith.constant 0 : index
    %68 = vector.load %arg12[%c0_33, %c0_34] : memref<2x128xf32, #tpu.memory_space<vmem>>, vector<2x128xf32>
    tpu.vector_store %arg12[%c0_33, %c0_34], %67 {strides = array<i32>} : memref<2x128xf32, #tpu.memory_space<vmem>>, vector<2x128xf32>,
    return
  }
  func.func @transform_0(%arg0: i32) -> (i32, i32) {
    %c0_i32 = arith.constant 0 : i32
    %c0_i32_0 = arith.constant 0 : i32
    %c0_i32_1 = arith.constant 0 : i32
    return %c0_i32, %c0_i32_0 : i32, i32
  }
  func.func @transform_1(%arg0: i32) -> (i32, i32) {
    %c0_i32 = arith.constant 0 : i32
    %c0_i32_0 = arith.constant 0 : i32
    %c0_i32_1 = arith.constant 0 : i32
    return %c0_i32, %c0_i32_0 : i32, i32
  }
  func.func @transform_2(%arg0: i32) -> (i32, i32) {
    %c0_i32 = arith.constant 0 : i32
    %c0_i32_0 = arith.constant 0 : i32
    %c0_i32_1 = arith.constant 0 : i32
    return %c0_i32, %c0_i32_0 : i32, i32
  }
  func.func @transform_3(%arg0: i32) -> (i32, i32) {
    %c0_i32 = arith.constant 0 : i32
    %c0_i32_0 = arith.constant 0 : i32
    %c0_i32_1 = arith.constant 0 : i32
    return %c0_i32, %c0_i32_0 : i32, i32
  }
  func.func @transform_4(%arg0: i32) -> (i32, i32) {
    %c0_i32 = arith.constant 0 : i32
    %c0_i32_0 = arith.constant 0 : i32
    %c0_i32_1 = arith.constant 0 : i32
    return %c0_i32, %c0_i32_0 : i32, i32
  }
  func.func @transform_5(%arg0: i32) -> (i32, i32) {
    %c0_i32 = arith.constant 0 : i32
    %c0_i32_0 = arith.constant 0 : i32
    %c0_i32_1 = arith.constant 0 : i32
    return %c0_i32, %c0_i32_0 : i32, i32
  }
  func.func @transform_6(%arg0: i32) -> (i32, i32) {
    %c0_i32 = arith.constant 0 : i32
    %c0_i32_0 = arith.constant 0 : i32
    %c0_i32_1 = arith.constant 0 : i32
    return %c0_i32, %c0_i32_0 : i32, i32
  }
  func.func @transform_7(%arg0: i32) -> (i32, i32) {
    %c0_i32 = arith.constant 0 : i32
    %c0_i32_0 = arith.constant 0 : i32
    %c0_i32_1 = arith.constant 0 : i32
    return %c0_i32, %c0_i32_0 : i32, i32
  }
  func.func @transform_8(%arg0: i32) -> (i32, i32) {
    %c0_i32 = arith.constant 0 : i32
    %c0_i32_0 = arith.constant 0 : i32
    %c0_i32_1 = arith.constant 0 : i32
    return %c0_i32, %c0_i32_0 : i32, i32
  }
  func.func @transform_9(%arg0: i32) -> (i32, i32) {
    %c0_i32 = arith.constant 0 : i32
    %c0_i32_0 = arith.constant 0 : i32
    %c0_i32_1 = arith.constant 0 : i32
    return %c0_i32, %c0_i32_0 : i32, i32
  }
  func.func @transform_10(%arg0: i32) -> (i32, i32, i32) {
    %c0_i32 = arith.constant 0 : i32
    %c0_i32_0 = arith.constant 0 : i32
    %c0_i32_1 = arith.constant 0 : i32
    return %arg0, %c0_i32, %c0_i32_0 : i32, i32, i32
  }
}

</mosaic_0001>

<llo_original>
// kernel: prior_profile_forward.1
$region0: #{prior_profile_forward.1}
  #allocation0 [shape = 'u32[]', space=smem, size = 0x4, offset = 0x4, fixed_abs, tag = 'smem constant byte address 0x4 - core index']
  #allocation1 [shape = 'u32[144,128]{1,0:T(1,128)}', space=vmem, size = 0x12000, scoped, tag = 'internal scratch']
  #allocation2 [shape = 'f32[2,128]{1,0:T(2,128)}', space=vmem, size = 0x400, scoped, tag = 'scratch operand']
  #allocation3 [shape = 'f32[2,8,32]{2,1,0:T(8,128)}', space=vmem, size = 0x2000, scoped, tag = 'scratch operand']
  #allocation4 [shape = 'f32[2,8,32]{2,1,0:T(8,128)}', space=vmem, size = 0x2000, scoped, tag = 'scratch operand']
  %s0 = inlined_call_operand.vmem [shape: bf16[16,32], index: 0, kind: input, shape index: {}]
  %s1 = inlined_call_operand.vmem [shape: bf16[32,32], index: 1, kind: input, shape index: {}]
  %s2 = inlined_call_operand.vmem [shape: f32[1,32], index: 2, kind: input, shape index: {}]
  %s3 = inlined_call_operand.vmem [shape: bf16[128,32], index: 3, kind: input, shape index: {}]
  %s4 = inlined_call_operand.vmem [shape: bf16[32,32], index: 4, kind: input, shape index: {}]
  %s5 = inlined_call_operand.vmem [shape: bf16[32,32], index: 5, kind: input, shape index: {}]
  %s6 = inlined_call_operand.vmem [shape: bf16[32,32], index: 6, kind: input, shape index: {}]
  %s7 = inlined_call_operand.vmem [shape: bf16[32,32], index: 7, kind: input, shape index: {}]
  %s8 = inlined_call_operand.vmem [shape: bf16[32,128], index: 8, kind: input, shape index: {}]
  %s9 = inlined_call_operand.vmem [shape: f32[1,128], index: 9, kind: input, shape index: {}]
  %s10 = inlined_call_operand.vmem [shape: s32[3,2,128], index: 10, kind: output, shape index: {}]
  %s11 = sld [smem:[#allocation0]]
  $region77: #{prior_profile_forward.1} parent=0
    _
  %s13 = ssub.s32 1, %s11
  %s14 = scalar_select 0, %s13, %s11
  loop: start=0, step=1, limit=5
  $region2: #{prior_profile_forward.1} parent=0 // loop_pre_header
    _
  $region3: #{prior_profile_forward.1} parent=0 // loop_header
    %s16 = sphi 0, %s20
    %p17 = scmp.ge.s32.totalorder %s16, 5
    %s24 = sphi 0, %s24
    %s26 = sphi 0, %s24
    %s27 = sphi 0, %s26
    %s41 = sphi 0, %s27
    %s45 = sphi 0, %s45
    %s47 = sphi 0, %s45
    %s48 = sphi 0, %s47
    %s62 = sphi 0, %s48
    %s66 = sphi 0, %s66
    %s68 = sphi 0, %s66
    %s69 = sphi 0, %s68
    %s83 = sphi 0, %s69
    %s87 = sphi 0, %s87
    %s89 = sphi 0, %s87
    %s90 = sphi 0, %s89
    %s104 = sphi 0, %s90
    %s108 = sphi 0, %s108
    %s110 = sphi 0, %s108
    %s111 = sphi 0, %s110
    %s125 = sphi 0, %s111
    %s129 = sphi 0, %s129
    %s131 = sphi 0, %s129
    %s132 = sphi 0, %s131
    %s146 = sphi 0, %s132
    %s150 = sphi 0, %s150
    %s152 = sphi 0, %s150
    %s153 = sphi 0, %s152
    %s167 = sphi 0, %s153
    %s171 = sphi 0, %s171
    %s173 = sphi 0, %s171
    %s174 = sphi 0, %s173
    %s188 = sphi 0, %s174
    %s192 = sphi 0, %s192
    %s194 = sphi 0, %s192
    %s195 = sphi 0, %s194
    %s209 = sphi 0, %s195
    %s213 = sphi 0, %s213
    %s215 = sphi 0, %s213
    %s216 = sphi 0, %s215
    %s230 = sphi 0, %s216
    %s236 = sphi 0, %s238
    %s239 = sphi 0, %s236
    %s240 = sphi 0, %s239
    %s256 = sphi 0, %s240
  $region4: #{prior_profile_forward.1} parent=0 // loop_header_branch
    %19 = sbr.rel (%p17) target = $region8
  $region5: #{prior_profile_forward.1} parent=0 // loop_body
    %s21 = ssub.s32 %s16, 1
    %s22 = ssub.s32 %s16, 2
    %s23 = sadd.s32 %s16, 1
    %s25 = sadd.s32 %s24, 1
    %p28 = scmp.eq.s32.totalorder %s16, 2
    %p29 = scmp.ne.s32.totalorder %s24, %s26
    %p30 = scmp.eq.s32.totalorder %s16, 0
    %p31 = por %p29, %p30
    %p32 = scmp.ne.s32.totalorder %s24, %s26
    %p33 = scmp.eq.s32.totalorder %s21, 2
    %p34 = por %p32, %p33
    %p35 = scmp.ne.s32.totalorder %s26, %s27
    %p36 = scmp.eq.s32.totalorder %s21, 0
    %p37 = por %p35, %p36
    %p38 = scmp.ne.s32.totalorder %s26, %s27
    %p39 = scmp.eq.s32.totalorder %s22, 2
    %p40 = por %p38, %p39
    %p42 = scmp.ne.s32.totalorder %s27, %s41
    %p43 = scmp.eq.s32.totalorder %s22, 0
    %p44 = por %p42, %p43
    %s46 = sadd.s32 %s45, 1
    %p49 = scmp.eq.s32.totalorder %s16, 2
    %p50 = scmp.ne.s32.totalorder %s45, %s47
    %p51 = scmp.eq.s32.totalorder %s16, 0
    %p52 = por %p50, %p51
    %p53 = scmp.ne.s32.totalorder %s45, %s47
    %p54 = scmp.eq.s32.totalorder %s21, 2
    %p55 = por %p53, %p54
    %p56 = scmp.ne.s32.totalorder %s47, %s48
    %p57 = scmp.eq.s32.totalorder %s21, 0
    %p58 = por %p56, %p57
    %p59 = scmp.ne.s32.totalorder %s47, %s48
    %p60 = scmp.eq.s32.totalorder %s22, 2
    %p61 = por %p59, %p60
    %p63 = scmp.ne.s32.totalorder %s48, %s62
    %p64 = scmp.eq.s32.totalorder %s22, 0
    %p65 = por %p63, %p64
    %s67 = sadd.s32 %s66, 1
    %p70 = scmp.eq.s32.totalorder %s16, 2
    %p71 = scmp.ne.s32.totalorder %s66, %s68
    %p72 = scmp.eq.s32.totalorder %s16, 0
    %p73 = por %p71, %p72
    %p74 = scmp.ne.s32.totalorder %s66, %s68
    %p75 = scmp.eq.s32.totalorder %s21, 2
    %p76 = por %p74, %p75
    %p77 = scmp.ne.s32.totalorder %s68, %s69
    %p78 = scmp.eq.s32.totalorder %s21, 0
    %p79 = por %p77, %p78
    %p80 = scmp.ne.s32.totalorder %s68, %s69
    %p81 = scmp.eq.s32.totalorder %s22, 2
    %p82 = por %p80, %p81
    %p84 = scmp.ne.s32.totalorder %s69, %s83
    %p85 = scmp.eq.s32.totalorder %s22, 0
    %p86 = por %p84, %p85
    %s88 = sadd.s32 %s87, 1
    %p91 = scmp.eq.s32.totalorder %s16, 2
    %p92 = scmp.ne.s32.totalorder %s87, %s89
    %p93 = scmp.eq.s32.totalorder %s16, 0
    %p94 = por %p92, %p93
    %p95 = scmp.ne.s32.totalorder %s87, %s89
    %p96 = scmp.eq.s32.totalorder %s21, 2
    %p97 = por %p95, %p96
    %p98 = scmp.ne.s32.totalorder %s89, %s90
    %p99 = scmp.eq.s32.totalorder %s21, 0
    %p100 = por %p98, %p99
    %p101 = scmp.ne.s32.totalorder %s89, %s90
    %p102 = scmp.eq.s32.totalorder %s22, 2
    %p103 = por %p101, %p102
    %p105 = scmp.ne.s32.totalorder %s90, %s104
    %p106 = scmp.eq.s32.totalorder %s22, 0
    %p107 = por %p105, %p106
    %s109 = sadd.s32 %s108, 1
    %p112 = scmp.eq.s32.totalorder %s16, 2
    %p113 = scmp.ne.s32.totalorder %s108, %s110
    %p114 = scmp.eq.s32.totalorder %s16, 0
    %p115 = por %p113, %p114
    %p116 = scmp.ne.s32.totalorder %s108, %s110
    %p117 = scmp.eq.s32.totalorder %s21, 2
    %p118 = por %p116, %p117
    %p119 = scmp.ne.s32.totalorder %s110, %s111
    %p120 = scmp.eq.s32.totalorder %s21, 0
    %p121 = por %p119, %p120
    %p122 = scmp.ne.s32.totalorder %s110, %s111
    %p123 = scmp.eq.s32.totalorder %s22, 2
    %p124 = por %p122, %p123
    %p126 = scmp.ne.s32.totalorder %s111, %s125
    %p127 = scmp.eq.s32.totalorder %s22, 0
    %p128 = por %p126, %p127
    %s130 = sadd.s32 %s129, 1
    %p133 = scmp.eq.s32.totalorder %s16, 2
    %p134 = scmp.ne.s32.totalorder %s129, %s131
    %p135 = scmp.eq.s32.totalorder %s16, 0
    %p136 = por %p134, %p135
    %p137 = scmp.ne.s32.totalorder %s129, %s131
    %p138 = scmp.eq.s32.totalorder %s21, 2
    %p139 = por %p137, %p138
    %p140 = scmp.ne.s32.totalorder %s131, %s132
    %p141 = scmp.eq.s32.totalorder %s21, 0
    %p142 = por %p140, %p141
    %p143 = scmp.ne.s32.totalorder %s131, %s132
    %p144 = scmp.eq.s32.totalorder %s22, 2
    %p145 = por %p143, %p144
    %p147 = scmp.ne.s32.totalorder %s132, %s146
    %p148 = scmp.eq.s32.totalorder %s22, 0
    %p149 = por %p147, %p148
    %s151 = sadd.s32 %s150, 1
    %p154 = scmp.eq.s32.totalorder %s16, 2
    %p155 = scmp.ne.s32.totalorder %s150, %s152
    %p156 = scmp.eq.s32.totalorder %s16, 0
    %p157 = por %p155, %p156
    %p158 = scmp.ne.s32.totalorder %s150, %s152
    %p159 = scmp.eq.s32.totalorder %s21, 2
    %p160 = por %p158, %p159
    %p161 = scmp.ne.s32.totalorder %s152, %s153
    %p162 = scmp.eq.s32.totalorder %s21, 0
    %p163 = por %p161, %p162
    %p164 = scmp.ne.s32.totalorder %s152, %s153
    %p165 = scmp.eq.s32.totalorder %s22, 2
    %p166 = por %p164, %p165
    %p168 = scmp.ne.s32.totalorder %s153, %s167
    %p169 = scmp.eq.s32.totalorder %s22, 0
    %p170 = por %p168, %p169
    %s172 = sadd.s32 %s171, 1
    %p175 = scmp.eq.s32.totalorder %s16, 2
    %p176 = scmp.ne.s32.totalorder %s171, %s173
    %p177 = scmp.eq.s32.totalorder %s16, 0
    %p178 = por %p176, %p177
    %p179 = scmp.ne.s32.totalorder %s171, %s173
    %p180 = scmp.eq.s32.totalorder %s21, 2
    %p181 = por %p179, %p180
    %p182 = scmp.ne.s32.totalorder %s173, %s174
    %p183 = scmp.eq.s32.totalorder %s21, 0
    %p184 = por %p182, %p183
    %p185 = scmp.ne.s32.totalorder %s173, %s174
    %p186 = scmp.eq.s32.totalorder %s22, 2
    %p187 = por %p185, %p186
    %p189 = scmp.ne.s32.totalorder %s174, %s188
    %p190 = scmp.eq.s32.totalorder %s22, 0
    %p191 = por %p189, %p190
    %s193 = sadd.s32 %s192, 1
    %p196 = scmp.eq.s32.totalorder %s16, 2
    %p197 = scmp.ne.s32.totalorder %s192, %s194
    %p198 = scmp.eq.s32.totalorder %s16, 0
    %p199 = por %p197, %p198
    %p200 = scmp.ne.s32.totalorder %s192, %s194
    %p201 = scmp.eq.s32.totalorder %s21, 2
    %p202 = por %p200, %p201
    %p203 = scmp.ne.s32.totalorder %s194, %s195
    %p204 = scmp.eq.s32.totalorder %s21, 0
    %p205 = por %p203, %p204
    %p206 = scmp.ne.s32.totalorder %s194, %s195
    %p207 = scmp.eq.s32.totalorder %s22, 2
    %p208 = por %p206, %p207
    %p210 = scmp.ne.s32.totalorder %s195, %s209
    %p211 = scmp.eq.s32.totalorder %s22, 0
    %p212 = por %p210, %p211
    %s214 = sadd.s32 %s213, 1
    %p217 = scmp.eq.s32.totalorder %s16, 2
    %p218 = scmp.ne.s32.totalorder %s213, %s215
    %p219 = scmp.eq.s32.totalorder %s16, 0
    %p220 = por %p218, %p219
    %p221 = scmp.ne.s32.totalorder %s213, %s215
    %p222 = scmp.eq.s32.totalorder %s21, 2
    %p223 = por %p221, %p222
    %p224 = scmp.ne.s32.totalorder %s215, %s216
    %p225 = scmp.eq.s32.totalorder %s21, 0
    %p226 = por %p224, %p225
    %p227 = scmp.ne.s32.totalorder %s215, %s216
    %p228 = scmp.eq.s32.totalorder %s22, 2
    %p229 = por %p227, %p228
    %p231 = scmp.ne.s32.totalorder %s216, %s230
    %p232 = scmp.eq.s32.totalorder %s22, 0
    %p233 = por %p231, %p232
    %s234 = ssub.s32 %s16, %s23
    %p235 = scmp.eq.s32.totalorder %s234, 0
    %s237 = sadd.s32 %s236, 1
    %s238 = scalar_select %p235, %s236, %s237
    %p241 = pneg %p235
    %p242 = scmp.eq.s32.totalorder %s16, 2
    %p243 = por %p241, %p242
    %p244 = scmp.ne.s32.totalorder %s236, %s239
    %p245 = scmp.eq.s32.totalorder %s16, 0
    %p246 = por %p244, %p245
    %p247 = scmp.ne.s32.totalorder %s236, %s239
    %p248 = scmp.eq.s32.totalorder %s21, 2
    %p249 = por %p247, %p248
    %p250 = scmp.ne.s32.totalorder %s239, %s240
    %p251 = scmp.eq.s32.totalorder %s21, 0
    %p252 = por %p250, %p251
    %p253 = scmp.ne.s32.totalorder %s239, %s240
    %p254 = scmp.eq.s32.totalorder %s22, 2
    %p255 = por %p253, %p254
    %p257 = scmp.ne.s32.totalorder %s240, %s256
    %p258 = scmp.eq.s32.totalorder %s22, 0
    %p259 = por %p257, %p258
    %p260 = scmp.le.s32.totalorder 1, %s16
    %p261 = scmp.lt.s32.totalorder %s16, 4
    %p262 = pnand %p260, %p261
    %p263 = pneg %p262
    // Predicated region
    $region9: #{prior_profile_forward.1} parent=5 // pred_check
      _
    $region10: #{prior_profile_forward.1} parent=5 // pred_check_branch
      %265 = sbr.rel (%p262) target = $region12
    $region11: #{prior_profile_forward.1} parent=5 // pred_region
      %s266 = ssub.s32 %s16, 1
      // Predicated region
      $region13: #{prior_profile_forward.1} parent=11 // pred_check
        %p267 = pneg %p37
      $region14: #{prior_profile_forward.1} parent=11 // pred_check_branch
        %269 = sbr.rel (%p267) target = $region16
      $region15: #{prior_profile_forward.1} parent=11 // pred_region
        _
      $region16: #{prior_profile_forward.1} parent=11 // pred_fallthru
        _
      // Predicated region
      $region17: #{prior_profile_forward.1} parent=11 // pred_check
        %p270 = pneg %p58
      $region18: #{prior_profile_forward.1} parent=11 // pred_check_branch
        %272 = sbr.rel (%p270) target = $region20
      $region19: #{prior_profile_forward.1} parent=11 // pred_region
        _
      $region20: #{prior_profile_forward.1} parent=11 // pred_fallthru
        _
      // Predicated region
      $region21: #{prior_profile_forward.1} parent=11 // pred_check
        %p273 = pneg %p79
      $region22: #{prior_profile_forward.1} parent=11 // pred_check_branch
        %275 = sbr.rel (%p273) target = $region24
      $region23: #{prior_profile_forward.1} parent=11 // pred_region
        _
      $region24: #{prior_profile_forward.1} parent=11 // pred_fallthru
        _
      // Predicated region
      $region25: #{prior_profile_forward.1} parent=11 // pred_check
        %p276 = pneg %p100
      $region26: #{prior_profile_forward.1} parent=11 // pred_check_branch
        %278 = sbr.rel (%p276) target = $region28
      $region27: #{prior_profile_forward.1} parent=11 // pred_region
        _
      $region28: #{prior_profile_forward.1} parent=11 // pred_fallthru
        _
      // Predicated region
      $region29: #{prior_profile_forward.1} parent=11 // pred_check
        %p279 = pneg %p121
      $region30: #{prior_profile_forward.1} parent=11 // pred_check_branch
        %281 = sbr.rel (%p279) target = $region32
      $region31: #{prior_profile_forward.1} parent=11 // pred_region
        _
      $region32: #{prior_profile_forward.1} parent=11 // pred_fallthru
        _
      // Predicated region
      $region33: #{prior_profile_forward.1} parent=11 // pred_check
        %p282 = pneg %p142
      $region34: #{prior_profile_forward.1} parent=11 // pred_check_branch
        %284 = sbr.rel (%p282) target = $region36
      $region35: #{prior_profile_forward.1} parent=11 // pred_region
        _
      $region36: #{prior_profile_forward.1} parent=11 // pred_fallthru
        _
      // Predicated region
      $region37: #{prior_profile_forward.1} parent=11 // pred_check
        %p285 = pneg %p163
      $region38: #{prior_profile_forward.1} parent=11 // pred_check_branch
        %287 = sbr.rel (%p285) target = $region40
      $region39: #{prior_profile_forward.1} parent=11 // pred_region
        _
      $region40: #{prior_profile_forward.1} parent=11 // pred_fallthru
        _
      // Predicated region
      $region41: #{prior_profile_forward.1} parent=11 // pred_check
        %p288 = pneg %p184
      $region42: #{prior_profile_forward.1} parent=11 // pred_check_branch
        %290 = sbr.rel (%p288) target = $region44
      $region43: #{prior_profile_forward.1} parent=11 // pred_region
        _
      $region44: #{prior_profile_forward.1} parent=11 // pred_fallthru
        _
      // Predicated region
      $region45: #{prior_profile_forward.1} parent=11 // pred_check
        %p291 = pneg %p205
      $region46: #{prior_profile_forward.1} parent=11 // pred_check_branch
        %293 = sbr.rel (%p291) target = $region48
      $region47: #{prior_profile_forward.1} parent=11 // pred_region
        _
      $region48: #{prior_profile_forward.1} parent=11 // pred_fallthru
        _
      // Predicated region
      $region49: #{prior_profile_forward.1} parent=11 // pred_check
        %p294 = pneg %p226
      $region50: #{prior_profile_forward.1} parent=11 // pred_check_branch
        %296 = sbr.rel (%p294) target = $region52
      $region51: #{prior_profile_forward.1} parent=11 // pred_region
        _
      $region52: #{prior_profile_forward.1} parent=11 // pred_fallthru
        _
    $region12: #{prior_profile_forward.1} parent=5 // pred_fallthru
      _
    %p297 = scmp.lt.s32.totalorder %s16, 3
    // Predicated region
    $region53: #{prior_profile_forward.1} parent=5 // pred_check
      %p298 = pneg %p297
    $region54: #{prior_profile_forward.1} parent=5 // pred_check_branch
      %300 = sbr.rel (%p298) target = $region56
    $region55: #{prior_profile_forward.1} parent=5 // pred_region
      _
    $region56: #{prior_profile_forward.1} parent=5 // pred_fallthru
      _
    %p301 = scmp.le.s32.totalorder 1, %s16
    %p302 = scmp.lt.s32.totalorder %s16, 4
    %p303 = pnand %p301, %p302
    %p304 = pneg %p303
    // Predicated region
    $region57: #{prior_profile_forward.1} parent=5 // pred_check
      _
    $region58: #{prior_profile_forward.1} parent=5 // pred_check_branch
      %306 = sbr.rel (%p303) target = $region60
    $region59: #{prior_profile_forward.1} parent=5 // pred_region
      %s307 = ssub.s32 %s16, 1
      %p308 = pneg %p37
      %p309 = pneg %p34
      %p310 = pneg %p58
      %p311 = pneg %p55
      %p312 = pneg %p79
      %p313 = pneg %p76
      %p314 = pneg %p100
      %p315 = pneg %p97
      %p316 = pneg %p121
      %p317 = pneg %p118
      %p318 = pneg %p142
      %p319 = pneg %p139
      %p320 = pneg %p163
      %p321 = pneg %p160
      %p322 = pneg %p184
      %p323 = pneg %p181
      %p324 = pneg %p205
      %p325 = pneg %p202
      %p326 = pneg %p226
      %p327 = pneg %p223
      %p328 = pneg %p252
      %p329 = pneg %p249
      %p330 = scmp.lt.s32.totalorder %s21, 2
      %s331 = scalar_select %p330, %s21, 2
      %s332 = smul.addr %s331, 2
      %s333 = scalar_lea.vmem %s10, %s332
      %p334 = scmp.lt.s32.totalorder %s21, 2
      %s335 = scalar_select %p334, %s21, 2
      %s336 = smul.addr %s335, 2
      %s337 = scalar_lea.vmem %s10, %s336
      %p339 = scmp.eq.s32.totalorder %s21, 0
      // Predicated region
      $region61: #{prior_profile_forward.1} parent=59 // pred_check
        %p340 = pneg %p339
      $region62: #{prior_profile_forward.1} parent=59 // pred_check_branch
        %342 = sbr.rel (%p340) target = $region64
      $region63: #{prior_profile_forward.1} parent=59 // pred_region
        %v343 = vld [vmem:[%s0] sm:$0xf]
        %v344 = vld [vmem:[%s0 + $0x4] sm:$0xf]
        %v345 = vld [vmem:[%s1] sm:$0xf]
        %v346 = vld [vmem:[%s1 + $0x4] sm:$0xf]
        %v347 = vld [vmem:[%s1 + $0x8] sm:$0xf]
        %v348 = vld [vmem:[%s1 + $0xc] sm:$0xf]
        %v349 = vld [vmem:[%s2] sm:$0x1]
        %v351 = vlaneseq
        %v352 = vshrl.u32 %v351, 7
        %v353 = vsub.s32 0, %v352
        %v354 = vrot.slane %v349, %v353
        %v358 = vunpack.c.l.b16 %v343
        %v359 = vunpack.c.l.b16 %v344
        %v360 = vpack.c.b16 %v359, %v358
        %v365 = vunpack.c.l.b16 %v345
        %v366 = vunpack.c.l.b16 %v346
        %v367 = vunpack.c.l.b16 %v347
        %v368 = vunpack.c.l.b16 %v348
        %v369 = vpack.c.b16 %v366, %v365
        %v370 = vpack.c.b16 %v368, %v367
        %vm373 = vcmask 261120
        %v375 = vsel %vm373, %v360, 0
        %377 = vmatprep.subr.bf16.mxu0 0
        %378 = vmatpush1.bf16.msra.mxu0 %v369
        %379 = vmatprep.subr.bf16.mxu0 0
        %380 = vmatpush1.bf16.msra.mxu0 %v370
        %381 = vmatprep.subr.bf16.mxu0 0
        %382 = vmatpush1.bf16.msra.mxu0 0
        %383 = vmatprep.subr.bf16.mxu0 0
        %384 = vmatpush1.bf16.msra.mxu0 0
        %385 = vmatprep.subr.bf16.mxu0 0
        %386 = vmatpush1.bf16.msra.mxu0 0
        %387 = vmatprep.subr.bf16.mxu0 0
        %388 = vmatpush1.bf16.msra.mxu0 0
        %389 = vmatprep.subr.bf16.mxu0 0
        %390 = vmatpush1.bf16.msra.mxu0 0
        %391 = vmatprep.subr.bf16.mxu0 0
        %392 = vmatpush1.bf16.msra.mxu0 0
        %393 = vmatprep.subr.bf16.mxu0 0
        %394 = vmatpush1.bf16.msra.mxu0 0
        %395 = vmatprep.subr.bf16.mxu0 0
        %396 = vmatpush1.bf16.msra.mxu0 0
        %397 = vmatprep.subr.bf16.mxu0 0
        %398 = vmatpush1.bf16.msra.mxu0 0
        %399 = vmatprep.subr.bf16.mxu0 0
        %400 = vmatpush1.bf16.msra.mxu0 0
        %401 = vmatprep.subr.bf16.mxu0 0
        %402 = vmatpush1.bf16.msra.mxu0 0
        %403 = vmatprep.subr.bf16.mxu0 0
        %404 = vmatpush1.bf16.msra.mxu0 0
        %405 = vmatprep.subr.bf16.mxu0 0
        %406 = vmatpush1.bf16.msra.mxu0 0
        %407 = vmatprep.subr.bf16.mxu0 0
        %408 = vmatpush1.bf16.msra.mxu0 0
        %409 = vmatprep.mubr.bf16.mxu0 0
        %410 = vmatmul.mubr.bf16.gmra.mrb[0].mxu0 %v375
        %v411 = vpop.f32.mrb[0].mxu0
        %v412 = vadd.f32 %v354, %v411
        %v413 = vpop.f32.mrb[0].mxu0
        %v414 = vpop.f32.mrb[0].mxu0
        %v415 = vadd.f32 %v354, %v414
        %v416 = vpop.f32.mrb[0].mxu0
        %417 = vdwg.mxu0
        %v418 = vtanh.pop %v412
        %v419 = vtanh.pop %v415
        %v420 = vpack.c.bf16 %v419, %v418
        %v421 = vld [vmem:[%s5] sm:$0xf]
        %v422 = vld [vmem:[%s5 + $0x4] sm:$0xf]
        %v423 = vld [vmem:[%s5 + $0x8] sm:$0xf]
        %v424 = vld [vmem:[%s5 + $0xc] sm:$0xf]
        %v429 = vunpack.c.l.b16 %v421
        %v430 = vunpack.c.l.b16 %v422
        %v431 = vunpack.c.l.b16 %v423
        %v432 = vunpack.c.l.b16 %v424
        %v433 = vpack.c.b16 %v430, %v429
        %v434 = vpack.c.b16 %v432, %v431
        %v438 = vsel %vm373, %v420, 0
        %440 = vmatprep.subr.bf16.mxu0 0
        %441 = vmatpush1.bf16.msra.mxu0 %v433
        %442 = vmatprep.subr.bf16.mxu0 0
        %443 = vmatpush1.bf16.msra.mxu0 %v434
        %444 = vmatprep.subr.bf16.mxu0 0
        %445 = vmatpush1.bf16.msra.mxu0 0
        %446 = vmatprep.subr.bf16.mxu0 0
        %447 = vmatpush1.bf16.msra.mxu0 0
        %448 = vmatprep.subr.bf16.mxu0 0
        %449 = vmatpush1.bf16.msra.mxu0 0
        %450 = vmatprep.subr.bf16.mxu0 0
        %451 = vmatpush1.bf16.msra.mxu0 0
        %452 = vmatprep.subr.bf16.mxu0 0
        %453 = vmatpush1.bf16.msra.mxu0 0
        %454 = vmatprep.subr.bf16.mxu0 0
        %455 = vmatpush1.bf16.msra.mxu0 0
        %456 = vmatprep.subr.bf16.mxu0 0
        %457 = vmatpush1.bf16.msra.mxu0 0
        %458 = vmatprep.subr.bf16.mxu0 0
        %459 = vmatpush1.bf16.msra.mxu0 0
        %460 = vmatprep.subr.bf16.mxu0 0
        %461 = vmatpush1.bf16.msra.mxu0 0
        %462 = vmatprep.subr.bf16.mxu0 0
        %463 = vmatpush1.bf16.msra.mxu0 0
        %464 = vmatprep.subr.bf16.mxu0 0
        %465 = vmatpush1.bf16.msra.mxu0 0
        %466 = vmatprep.subr.bf16.mxu0 0
        %467 = vmatpush1.bf16.msra.mxu0 0
        %468 = vmatprep.subr.bf16.mxu0 0
        %469 = vmatpush1.bf16.msra.mxu0 0
        %470 = vmatprep.subr.bf16.mxu0 0
        %471 = vmatpush1.bf16.msra.mxu0 0
        %472 = vmatprep.mubr.bf16.mxu0 0
        %473 = vmatmul.mubr.bf16.gmra.mrb[0].mxu0 %v438
        %v474 = vpop.f32.mrb[0].mxu0
        %v475 = vadd.f32 0.0, %v474
        %v476 = vpop.f32.mrb[0].mxu0
        %v477 = vpop.f32.mrb[0].mxu0
        %v478 = vadd.f32 0.0, %v477
        %v479 = vpop.f32.mrb[0].mxu0
        %480 = vdwg.mxu0
        %481 = vst.msk [vmem:[#allocation3] sm:$0xff] %vm373, %v475
        %482 = vst.msk [vmem:[#allocation3 + $0x8] sm:$0xff] %vm373, %v478
        %v483 = vld [vmem:[%s6] sm:$0xf]
        %v484 = vld [vmem:[%s6 + $0x4] sm:$0xf]
        %v485 = vld [vmem:[%s6 + $0x8] sm:$0xf]
        %v486 = vld [vmem:[%s6 + $0xc] sm:$0xf]
        %v491 = vunpack.c.l.b16 %v483
        %v492 = vunpack.c.l.b16 %v484
        %v493 = vunpack.c.l.b16 %v485
        %v494 = vunpack.c.l.b16 %v486
        %v495 = vpack.c.b16 %v492, %v491
        %v496 = vpack.c.b16 %v494, %v493
        %499 = vmatprep.subr.bf16.mxu0 0
        %500 = vmatpush1.bf16.msra.mxu0 %v495
        %501 = vmatprep.subr.bf16.mxu0 0
        %502 = vmatpush1.bf16.msra.mxu0 %v496
        %503 = vmatprep.subr.bf16.mxu0 0
        %504 = vmatpush1.bf16.msra.mxu0 0
        %505 = vmatprep.subr.bf16.mxu0 0
        %506 = vmatpush1.bf16.msra.mxu0 0
        %507 = vmatprep.subr.bf16.mxu0 0
        %508 = vmatpush1.bf16.msra.mxu0 0
        %509 = vmatprep.subr.bf16.mxu0 0
        %510 = vmatpush1.bf16.msra.mxu0 0
        %511 = vmatprep.subr.bf16.mxu0 0
        %512 = vmatpush1.bf16.msra.mxu0 0
        %513 = vmatprep.subr.bf16.mxu0 0
        %514 = vmatpush1.bf16.msra.mxu0 0
        %515 = vmatprep.subr.bf16.mxu0 0
        %516 = vmatpush1.bf16.msra.mxu0 0
        %517 = vmatprep.subr.bf16.mxu0 0
        %518 = vmatpush1.bf16.msra.mxu0 0
        %519 = vmatprep.subr.bf16.mxu0 0
        %520 = vmatpush1.bf16.msra.mxu0 0
        %521 = vmatprep.subr.bf16.mxu0 0
        %522 = vmatpush1.bf16.msra.mxu0 0
        %523 = vmatprep.subr.bf16.mxu0 0
        %524 = vmatpush1.bf16.msra.mxu0 0
        %525 = vmatprep.subr.bf16.mxu0 0
        %526 = vmatpush1.bf16.msra.mxu0 0
        %527 = vmatprep.subr.bf16.mxu0 0
        %528 = vmatpush1.bf16.msra.mxu0 0
        %529 = vmatprep.subr.bf16.mxu0 0
        %530 = vmatpush1.bf16.msra.mxu0 0
        %531 = vmatprep.mubr.bf16.mxu0 0
        %532 = vmatmul.mubr.bf16.gmra.mrb[0].mxu0 %v438
        %v533 = vpop.f32.mrb[0].mxu0
        %v534 = vadd.f32 0.0, %v533
        %v535 = vpop.f32.mrb[0].mxu0
        %v536 = vpop.f32.mrb[0].mxu0
        %v537 = vadd.f32 0.0, %v536
        %v538 = vpop.f32.mrb[0].mxu0
        %539 = vdwg.mxu0
        %540 = vst.msk [vmem:[#allocation4] sm:$0xff] %vm373, %v534
        %541 = vst.msk [vmem:[#allocation4 + $0x8] sm:$0xff] %vm373, %v537
        %v542 = vlaneseq
        %v543 = vand.u32 %v542, 127
        %vm544 = vcmp.eq.s32.totalorder %v543, 0
        %v545 = vsel %vm544, 1, 0
        %v546 = vcvt.s32.f32 %v545
        %547 = vst [vmem:[#allocation2] sm:$0x3] %v546
      $region64: #{prior_profile_forward.1} parent=59 // pred_fallthru
        _
      %v548 = vld [vmem:[#allocation2] sm:$0x3]
      %v549 = vpack.c.bf16 %v548, %v548
      %v550 = vld [vmem:[%s3] sm:$0xf]
      %v551 = vld [vmem:[%s3 + $0x4] sm:$0xf]
      %v552 = vld [vmem:[%s3 + $0x8] sm:$0xf]
      %v553 = vld [vmem:[%s3 + $0xc] sm:$0xf]
      %v554 = vld [vmem:[%s3 + $0x10] sm:$0xf]
      %v555 = vld [vmem:[%s3 + $0x14] sm:$0xf]
      %v556 = vld [vmem:[%s3 + $0x18] sm:$0xf]
      %v557 = vld [vmem:[%s3 + $0x1c] sm:$0xf]
      %v558 = vld [vmem:[%s3 + $0x20] sm:$0xf]
      %v559 = vld [vmem:[%s3 + $0x24] sm:$0xf]
      %v560 = vld [vmem:[%s3 + $0x28] sm:$0xf]
      %v561 = vld [vmem:[%s3 + $0x2c] sm:$0xf]
      %v562 = vld [vmem:[%s3 + $0x30] sm:$0xf]
      %v563 = vld [vmem:[%s3 + $0x34] sm:$0xf]
      %v564 = vld [vmem:[%s3 + $0x38] sm:$0xf]
      %v565 = vld [vmem:[%s3 + $0x3c] sm:$0xf]
      %v582 = vunpack.c.l.b16 %v550
      %v583 = vunpack.c.l.b16 %v551
      %v584 = vunpack.c.l.b16 %v552
      %v585 = vunpack.c.l.b16 %v553
      %v586 = vunpack.c.l.b16 %v554
      %v587 = vunpack.c.l.b16 %v555
      %v588 = vunpack.c.l.b16 %v556
      %v589 = vunpack.c.l.b16 %v557
      %v590 = vunpack.c.l.b16 %v558
      %v591 = vunpack.c.l.b16 %v559
      %v592 = vunpack.c.l.b16 %v560
      %v593 = vunpack.c.l.b16 %v561
      %v594 = vunpack.c.l.b16 %v562
      %v595 = vunpack.c.l.b16 %v563
      %v596 = vunpack.c.l.b16 %v564
      %v597 = vunpack.c.l.b16 %v565
      %v598 = vpack.c.b16 %v583, %v582
      %v599 = vpack.c.b16 %v585, %v584
      %v600 = vpack.c.b16 %v587, %v586
      %v601 = vpack.c.b16 %v589, %v588
      %v602 = vpack.c.b16 %v591, %v590
      %v603 = vpack.c.b16 %v593, %v592
      %v604 = vpack.c.b16 %v595, %v594
      %v605 = vpack.c.b16 %v597, %v596
      %614 = vmatprep.subr.bf16.mxu0 0
      %615 = vmatpush1.bf16.msra.mxu0 %v598
      %616 = vmatprep.subr.bf16.mxu0 0
      %617 = vmatpush1.bf16.msra.mxu0 %v599
      %618 = vmatprep.subr.bf16.mxu0 0
      %619 = vmatpush1.bf16.msra.mxu0 %v600
      %620 = vmatprep.subr.bf16.mxu0 0
      %621 = vmatpush1.bf16.msra.mxu0 %v601
      %622 = vmatprep.subr.bf16.mxu0 0
      %623 = vmatpush1.bf16.msra.mxu0 %v602
      %624 = vmatprep.subr.bf16.mxu0 0
      %625 = vmatpush1.bf16.msra.mxu0 %v603
      %626 = vmatprep.subr.bf16.mxu0 0
      %627 = vmatpush1.bf16.msra.mxu0 %v604
      %628 = vmatprep.subr.bf16.mxu0 0
      %629 = vmatpush1.bf16.msra.mxu0 %v605
      %630 = vmatprep.subr.bf16.mxu0 0
      %631 = vmatpush1.bf16.msra.mxu0 0
      %632 = vmatprep.subr.bf16.mxu0 0
      %633 = vmatpush1.bf16.msra.mxu0 0
      %634 = vmatprep.subr.bf16.mxu0 0
      %635 = vmatpush1.bf16.msra.mxu0 0
      %636 = vmatprep.subr.bf16.mxu0 0
      %637 = vmatpush1.bf16.msra.mxu0 0
      %638 = vmatprep.subr.bf16.mxu0 0
      %639 = vmatpush1.bf16.msra.mxu0 0
      %640 = vmatprep.subr.bf16.mxu0 0
      %641 = vmatpush1.bf16.msra.mxu0 0
      %642 = vmatprep.subr.bf16.mxu0 0
      %643 = vmatpush1.bf16.msra.mxu0 0
      %644 = vmatprep.subr.bf16.mxu0 0
      %645 = vmatpush1.bf16.msra.mxu0 0
      %646 = vmatprep.mubr.bf16.mxu0 0
      %647 = vmatmul.mubr.bf16.gmra.mrb[0].mxu0 %v549
      %v648 = vpop.f32.mrb[0].mxu0
      %v649 = vadd.f32 0.0, %v648
      %v650 = vpop.f32.mrb[0].mxu0
      %v651 = vpop.f32.mrb[0].mxu0
      %v652 = vpop.f32.mrb[0].mxu0
      %653 = vdwg.mxu0
      %v654 = vpack.c.bf16 %v649, %v649
      %v655 = vld [vmem:[%s4] sm:$0xf]
      %v656 = vld [vmem:[%s4 + $0x4] sm:$0xf]
      %v657 = vld [vmem:[%s4 + $0x8] sm:$0xf]
      %v658 = vld [vmem:[%s4 + $0xc] sm:$0xf]
      %v663 = vunpack.c.l.b16 %v655
      %v664 = vunpack.c.l.b16 %v656
      %v665 = vunpack.c.l.b16 %v657
      %v666 = vunpack.c.l.b16 %v658
      %v667 = vpack.c.b16 %v664, %v663
      %v668 = vpack.c.b16 %v666, %v665
      %vm671 = vcmask 261120
      %v673 = vsel %vm671, %v654, 0
      %675 = vmatprep.subr.bf16.mxu0 0
      %676 = vmatpush1.bf16.msra.mxu0 %v667
      %677 = vmatprep.subr.bf16.mxu0 0
      %678 = vmatpush1.bf16.msra.mxu0 %v668
      %679 = vmatprep.subr.bf16.mxu0 0
      %680 = vmatpush1.bf16.msra.mxu0 0
      %681 = vmatprep.subr.bf16.mxu0 0
      %682 = vmatpush1.bf16.msra.mxu0 0
      %683 = vmatprep.subr.bf16.mxu0 0
      %684 = vmatpush1.bf16.msra.mxu0 0
      %685 = vmatprep.subr.bf16.mxu0 0
      %686 = vmatpush1.bf16.msra.mxu0 0
      %687 = vmatprep.subr.bf16.mxu0 0
      %688 = vmatpush1.bf16.msra.mxu0 0
      %689 = vmatprep.subr.bf16.mxu0 0
      %690 = vmatpush1.bf16.msra.mxu0 0
      %691 = vmatprep.subr.bf16.mxu0 0
      %692 = vmatpush1.bf16.msra.mxu0 0
      %693 = vmatprep.subr.bf16.mxu0 0
      %694 = vmatpush1.bf16.msra.mxu0 0
      %695 = vmatprep.subr.bf16.mxu0 0
      %696 = vmatpush1.bf16.msra.mxu0 0
      %697 = vmatprep.subr.bf16.mxu0 0
      %698 = vmatpush1.bf16.msra.mxu0 0
      %699 = vmatprep.subr.bf16.mxu0 0
      %700 = vmatpush1.bf16.msra.mxu0 0
      %701 = vmatprep.subr.bf16.mxu0 0
      %702 = vmatpush1.bf16.msra.mxu0 0
      %703 = vmatprep.subr.bf16.mxu0 0
      %704 = vmatpush1.bf16.msra.mxu0 0
      %705 = vmatprep.subr.bf16.mxu0 0
      %706 = vmatpush1.bf16.msra.mxu0 0
      %707 = vmatprep.mubr.bf16.mxu0 0
      %708 = vmatmul.mubr.bf16.gmra.mrb[0].mxu0 %v673
      %v709 = vpop.f32.mrb[0].mxu0
      %v710 = vadd.f32 0.0, %v709
      %v711 = vpop.f32.mrb[0].mxu0
      %v712 = vpop.f32.mrb[0].mxu0
      %v713 = vpop.f32.mrb[0].mxu0
      %714 = vdwg.mxu0
      %v717 = vunpack.c.l.s4 1966171168
      %v718 = vunpack.c.0.s8 %v717
      %v719 = vlaneseq
      %v720 = vshrl.u32 %v719, 7
      %v721 = vsub.s32 %v718, %v720
      %v722 = vrot.slane %v710, %v721
      %v723 = vcombine.high %v722, %v722
      %v725 = vunpack.c.l.s4 1966171168
      %v726 = vunpack.c.0.s8 %v725
      %v727 = vlaneseq
      %v728 = vshrl.u32 %v727, 7
      %v729 = vsub.s32 %v726, %v728
      %v730 = vrot.slane %v722, %v729
      %v732 = vunpack.c.l.s4 1966171168
      %v733 = vunpack.c.0.s8 %v732
      %v734 = vlaneseq
      %v735 = vshrl.u32 %v734, 7
      %v736 = vsub.s32 %v733, %v735
      %v737 = vrot.slane %v723, %v736
      %v738 = vld [vmem:[#allocation3] sm:$0xff]
      %v739 = vld [vmem:[#allocation3 + $0x8] sm:$0xff]
      %v740 = vlaneseq
      %v741 = vshrl.u32 %v740, 7
      %v742 = vsub.s32 0, %v741
      %v743 = vrot.slane %v730, %v742
      %v744 = vlaneseq
      %v745 = vshrl.u32 %v744, 7
      %v746 = vsub.s32 0, %v745
      %v747 = vrot.slane %v737, %v746
      %v750 = vmul.f32 %v743, %v738
      %v751 = vmul.f32 %v747, %v739
      %v752 = vsel %vm671, %v750, 0.0
      %753 = vadd.xlane.f32.xlu0 %v752
      %v754 = vpop.xlane.xlu0 %753
      %v755 = vsel %vm671, %v751, 0.0
      %756 = vadd.xlane.f32.xlu0 %v755
      %v757 = vpop.xlane.xlu0 %756
      %v758 = vmul.f32 %v754, 0.17677669
      %v759 = vmul.f32 %v757, 0.17677669
      %v762 = vlaneseq
      %v763 = vand.u32 %v762, 127
      %v764 = vlaneseq
      %v765 = vshrl.u32 %v764, 7
      %v766 = vsub.s32 %v763, %v765
      %v767 = vrot.slane %v758, %v766
      %v768 = vlaneseq
      %v769 = vshrl.u32 %v768, 7
      %v770 = vsub.s32 %v763, %v769
      %v771 = vrot.slane %v759, %v770
      %vm772 = vcmask 1041409
      %v773 = vsel %vm772, %v771, %v767
      %vm775 = vcmask 58368
      %v776 = vsel %vm775, %v773, -inf
      %777 = vmax.xlane.f32.xlu0 %v776
      %v778 = vpop.xlane.xlu0 %777
      %v780 = vlaneseq
      %v781 = vshrl.u32 %v780, 7
      %v782 = vsub.s32 0, %v781
      %v783 = vrot.slane %v778, %v782
      %v784 = vlaneseq
      %v785 = vshrl.u32 %v784, 7
      %v786 = vsub.s32 1, %v785
      %v787 = vrot.slane %v778, %v786
      %v790 = vsub.f32 %v758, %v783
      %v791 = vsub.f32 %v759, %v787
      %v792 = vmul.f32 %v790, 1.442695
      %v793 = vpow.pop %v792
      %v794 = vmul.f32 %v791, 1.442695
      %v795 = vpow.pop %v794
      %798 = vset.pattern.permute.xlu0 0
      %799 = vperm.xlu0 %798, %v793
      %v800 = vpop.permute.xlu0 %799
      %801 = vset.pattern.permute.xlu0 0
      %802 = vperm.xlu0 %801, %v795
      %v803 = vpop.permute.xlu0 %802
      %v804 = vlaneseq
      %v805 = vshrl.u32 %v804, 7
      %v806 = vsub.s32 %v763, %v805
      %v807 = vrot.slane %v800, %v806
      %v808 = vlaneseq
      %v809 = vshrl.u32 %v808, 7
      %v810 = vsub.s32 %v763, %v809
      %v811 = vrot.slane %v803, %v810
      %v812 = vsel %vm772, %v811, %v807
      %v814 = vsel %vm775, %v812, 0.0
      %815 = vadd.xlane.f32.xlu0 %v814
      %v816 = vpop.xlane.xlu0 %815
      %v817 = vrcp.pop %v816
      %v819 = vlaneseq
      %v820 = vshrl.u32 %v819, 7
      %v821 = vsub.s32 0, %v820
      %v822 = vrot.slane %v817, %v821
      %v823 = vlaneseq
      %v824 = vshrl.u32 %v823, 7
      %v825 = vsub.s32 1, %v824
      %v826 = vrot.slane %v817, %v825
      %v829 = vmul.f32 %v793, %v822
      %v830 = vmul.f32 %v795, %v826
      %v831 = vld [vmem:[#allocation4] sm:$0xff]
      %v832 = vld [vmem:[#allocation4 + $0x8] sm:$0xff]
      %834 = vset.pattern.permute.xlu0 0
      %835 = vperm.xlu0 %834, %v829
      %v836 = vpop.permute.xlu0 %835
      %839 = vset.pattern.permute.xlu0 0
      %840 = vperm.xlu0 %839, %v830
      %v841 = vpop.permute.xlu0 %840
      %v843 = vmul.f32 %v836, %v831
      %v844 = vmul.f32 %v841, %v832
      %v845 = vsel %vm671, %v843, 0.0
      %v846 = vrot.slane %v845, 4
      %v847 = vadd.f32 %v845, %v846
      %v848 = vrot.slane %v847, 2
      %v849 = vadd.f32 %v847, %v848
      %v850 = vrot.slane %v849, 1
      %v851 = vadd.f32 %v849, %v850
      %v852 = vsel %vm671, %v844, 0.0
      %v853 = vrot.slane %v852, 4
      %v854 = vadd.f32 %v852, %v853
      %v855 = vrot.slane %v854, 2
      %v856 = vadd.f32 %v854, %v855
      %v857 = vrot.slane %v856, 1
      %v858 = vadd.f32 %v856, %v857
      %v860 = vrot.slane %v649, 1
      %v863 = vadd.f32 %v851, %v649
      %v864 = vadd.f32 %v858, %v860
      %v865 = vpack.c.bf16 %v863, %v863
      %v866 = vpack.c.bf16 %v864, %v864
      %v867 = vld [vmem:[%s7] sm:$0xf]
      %v868 = vld [vmem:[%s7 + $0x4] sm:$0xf]
      %v869 = vld [vmem:[%s7 + $0x8] sm:$0xf]
      %v870 = vld [vmem:[%s7 + $0xc] sm:$0xf]
      %v873 = vunpack.c.l.b16 %v865
      %v874 = vunpack.c.l.b16 %v866
      %v875 = vrot.slane %v874, 7
      %v876 = vsel %vm772, %v875, %v873
      %v877 = vpack.c.b16 %v876, %v876
      %v882 = vunpack.c.l.b16 %v867
      %v883 = vunpack.c.l.b16 %v868
      %v884 = vunpack.c.l.b16 %v869
      %v885 = vunpack.c.l.b16 %v870
      %v886 = vpack.c.b16 %v883, %v882
      %v887 = vpack.c.b16 %v885, %v884
      %v891 = vsel %vm671, %v877, 0
      %893 = vmatprep.subr.bf16.mxu0 0
      %894 = vmatpush1.bf16.msra.mxu0 %v886
      %895 = vmatprep.subr.bf16.mxu0 0
      %896 = vmatpush1.bf16.msra.mxu0 %v887
      %897 = vmatprep.subr.bf16.mxu0 0
      %898 = vmatpush1.bf16.msra.mxu0 0
      %899 = vmatprep.subr.bf16.mxu0 0
      %900 = vmatpush1.bf16.msra.mxu0 0
      %901 = vmatprep.subr.bf16.mxu0 0
      %902 = vmatpush1.bf16.msra.mxu0 0
      %903 = vmatprep.subr.bf16.mxu0 0
      %904 = vmatpush1.bf16.msra.mxu0 0
      %905 = vmatprep.subr.bf16.mxu0 0
      %906 = vmatpush1.bf16.msra.mxu0 0
      %907 = vmatprep.subr.bf16.mxu0 0
      %908 = vmatpush1.bf16.msra.mxu0 0
      %909 = vmatprep.subr.bf16.mxu0 0
      %910 = vmatpush1.bf16.msra.mxu0 0
      %911 = vmatprep.subr.bf16.mxu0 0
      %912 = vmatpush1.bf16.msra.mxu0 0
      %913 = vmatprep.subr.bf16.mxu0 0
      %914 = vmatpush1.bf16.msra.mxu0 0
      %915 = vmatprep.subr.bf16.mxu0 0
      %916 = vmatpush1.bf16.msra.mxu0 0
      %917 = vmatprep.subr.bf16.mxu0 0
      %918 = vmatpush1.bf16.msra.mxu0 0
      %919 = vmatprep.subr.bf16.mxu0 0
      %920 = vmatpush1.bf16.msra.mxu0 0
      %921 = vmatprep.subr.bf16.mxu0 0
      %922 = vmatpush1.bf16.msra.mxu0 0
      %923 = vmatprep.subr.bf16.mxu0 0
      %924 = vmatpush1.bf16.msra.mxu0 0
      %925 = vmatprep.mubr.bf16.mxu0 0
      %926 = vmatmul.mubr.bf16.gmra.mrb[0].mxu0 %v891
      %v927 = vpop.f32.mrb[0].mxu0
      %v928 = vadd.f32 0.0, %v927
      %v929 = vpop.f32.mrb[0].mxu0
      %v930 = vpop.f32.mrb[0].mxu0
      %v931 = vpop.f32.mrb[0].mxu0
      %932 = vdwg.mxu0
      %v933 = vpack.c.bf16 %v928, %v928
      %v934 = vld [vmem:[%s8] sm:$0xf]
      %v935 = vld [vmem:[%s8 + $0x4] sm:$0xf]
      %v936 = vld [vmem:[%s8 + $0x8] sm:$0xf]
      %v937 = vld [vmem:[%s8 + $0xc] sm:$0xf]
      %v938 = vld [vmem:[%s9] sm:$0x1]
      %v940 = vlaneseq
      %v941 = vshrl.u32 %v940, 7
      %v942 = vsub.s32 0, %v941
      %v943 = vrot.slane %v938, %v942
      %v949 = vunpack.c.l.b16 %v934
      %v950 = vunpack.c.l.b16 %v935
      %v951 = vunpack.c.l.b16 %v936
      %v952 = vunpack.c.l.b16 %v937
      %v953 = vpack.c.b16 %v950, %v949
      %v954 = vpack.c.b16 %v952, %v951
      %v958 = vsel %vm671, %v933, 0
      %960 = vmatprep.subr.bf16.mxu0 0
      %961 = vmatpush1.bf16.msra.mxu0 %v953
      %962 = vmatprep.subr.bf16.mxu0 0
      %963 = vmatpush1.bf16.msra.mxu0 %v954
      %964 = vmatprep.subr.bf16.mxu0 0
      %965 = vmatpush1.bf16.msra.mxu0 0
      %966 = vmatprep.subr.bf16.mxu0 0
      %967 = vmatpush1.bf16.msra.mxu0 0
      %968 = vmatprep.subr.bf16.mxu0 0
      %969 = vmatpush1.bf16.msra.mxu0 0
      %970 = vmatprep.subr.bf16.mxu0 0
      %971 = vmatpush1.bf16.msra.mxu0 0
      %972 = vmatprep.subr.bf16.mxu0 0
      %973 = vmatpush1.bf16.msra.mxu0 0
      %974 = vmatprep.subr.bf16.mxu0 0
      %975 = vmatpush1.bf16.msra.mxu0 0
      %976 = vmatprep.subr.bf16.mxu0 0
      %977 = vmatpush1.bf16.msra.mxu0 0
      %978 = vmatprep.subr.bf16.mxu0 0
      %979 = vmatpush1.bf16.msra.mxu0 0
      %980 = vmatprep.subr.bf16.mxu0 0
      %981 = vmatpush1.bf16.msra.mxu0 0
      %982 = vmatprep.subr.bf16.mxu0 0
      %983 = vmatpush1.bf16.msra.mxu0 0
      %984 = vmatprep.subr.bf16.mxu0 0
      %985 = vmatpush1.bf16.msra.mxu0 0
      %986 = vmatprep.subr.bf16.mxu0 0
      %987 = vmatpush1.bf16.msra.mxu0 0
      %988 = vmatprep.subr.bf16.mxu0 0
      %989 = vmatpush1.bf16.msra.mxu0 0
      %990 = vmatprep.subr.bf16.mxu0 0
      %991 = vmatpush1.bf16.msra.mxu0 0
      %992 = vmatprep.mubr.bf16.mxu0 0
      %993 = vmatmul.mubr.bf16.gmra.mrb[0].mxu0 %v958
      %v994 = vpop.f32.mrb[0].mxu0
      %v995 = vadd.f32 %v943, %v994
      %v996 = vpop.f32.mrb[0].mxu0
      %v997 = vpop.f32.mrb[0].mxu0
      %v998 = vpop.f32.mrb[0].mxu0
      %999 = vdwg.mxu0
      %vm1000 = vcmask 1041408
      %v1001 = vsel %vm1000, %v995, -inf
      %1002 = vmax.xlane.f32.xlu0 %v1001
      %v1003 = vpop.xlane.xlu0 %1002
      %v1004 = vsub.f32 %v995, %v1003
      %v1005 = vmul.f32 %v1004, 1.442695
      %v1006 = vpow.pop %v1005
      %v1007 = vsel %vm1000, %v1006, 0.0
      %1008 = vadd.xlane.f32.xlu0 %v1007
      %v1009 = vpop.xlane.xlu0 %1008
      %v1010 = vrcp.pop %v1009
      %v1011 = vmul.f32 %v1006, %v1010
      %v1012 = vsel %vm1000, %v1011, -inf
      %1013 = vmax.xlane.f32.xlu0 %v1012
      %v1014 = vpop.xlane.xlu0 %1013
      %vm1015 = vcmp.ge.f32.partialorder %v1011, %v1014
      %v1016 = vsel %vm1015, %v763, 128
      %v1017 = vsel %vm1000, %v1016, 2147483647
      %v1018 = vand.u32 %v1017, 65535
      %v1019 = vshra.s32 %v1017, 16
      %v1020 = vcvt.s32.f32 %v1018
      %v1021 = vcvt.s32.f32 %v1019
      %1022 = vmin.xlane.f32.xlu0 %v1021
      %v1023 = vpop.xlane.xlu0 %1022
      %vm1024 = vcmp.eq.f32.partialorder %v1021, %v1023
      %v1025 = vsel %vm1024, %v1020, inf
      %1026 = vmin.xlane.f32.xlu0 %v1025
      %v1027 = vpop.xlane.xlu0 %1026
      %v1028 = vcvt.f32.s32 %v1027
      %v1029 = vcvt.f32.s32 %v1023
      %v1030 = vshll.u32 %v1029, 16
      %v1031 = vadd.s32 %v1030, %v1028
      %1032 = vst [vmem:[%s337] sm:$0x3] %v1031
      %vm1033 = vcmp.eq.s32.totalorder %v763, %v1031
      %v1034 = vsel %vm1033, 1, 0
      %v1035 = vcvt.s32.f32 %v1034
      %1036 = vst [vmem:[#allocation2] sm:$0x3] %v1035
      %p1037 = scmp.lt.s32.totalorder %s21, 2
      %s1038 = scalar_select %p1037, %s21, 2
      %s1039 = smul.addr %s1038, 2
      %s1040 = scalar_lea.vmem %s10, %s1039
      // Predicated region
      $region65: #{prior_profile_forward.1} parent=59 // pred_check
        %p1041 = pneg %p249
      $region66: #{prior_profile_forward.1} parent=59 // pred_check_branch
        %1043 = sbr.rel (%p1041) target = $region68
      $region67: #{prior_profile_forward.1} parent=59 // pred_region
        _
      $region68: #{prior_profile_forward.1} parent=59 // pred_fallthru
        _
    $region60: #{prior_profile_forward.1} parent=5 // pred_fallthru
      _
    %p1044 = scmp.le.s32.totalorder 2, %s16
    // Predicated region
    $region69: #{prior_profile_forward.1} parent=5 // pred_check
      %p1045 = pneg %p1044
    $region70: #{prior_profile_forward.1} parent=5 // pred_check_branch
      %1047 = sbr.rel (%p1045) target = $region72
    $region71: #{prior_profile_forward.1} parent=5 // pred_region
      %s1048 = ssub.s32 %s16, 2
      // Predicated region
      $region73: #{prior_profile_forward.1} parent=71 // pred_check
        %p1049 = pneg %p255
      $region74: #{prior_profile_forward.1} parent=71 // pred_check_branch
        %1051 = sbr.rel (%p1049) target = $region76
      $region75: #{prior_profile_forward.1} parent=71 // pred_region
        %p1052 = scmp.lt.s32.totalorder %s22, 2
        %s1053 = scalar_select %p1052, %s22, 2
        %s1054 = smul.addr %s1053, 2
        %s1055 = scalar_lea.vmem %s10, %s1054
      $region76: #{prior_profile_forward.1} parent=71 // pred_fallthru
        _
    $region72: #{prior_profile_forward.1} parent=5 // pred_fallthru
      _
  $region6: #{prior_profile_forward.1} parent=0 // loop_footer
    %s20 = sadd.s32 1, %s16
  $region7: #{prior_profile_forward.1} parent=0 // loop_footer_branch
    %15 = sbr.rel target = $region3
  $region8: #{prior_profile_forward.1} parent=0 // loop_exit
    _

</llo_original>
